<compile_context>
chip_gen: v7x
topology: tpu7x:2x2x1
jax: 0.10.0
libtpu: 0.0.40
codegen_flags: <defaults>
</compile_context>

<pallas_src>
import functools

import jax
import jax.numpy as jnp
from jax import lax
from jax.experimental import pallas as pl
from jax.experimental.pallas import tpu as pltpu


def _conv3x3_tanh_kernel(x_ref, w_ref, o_ref, *, H, W):
    """One batch image per grid step.

    x_ref: (1, Cp, H*W + 2*(W+1))  channel-padded, flat-halo-padded NCHW-flat input
    w_ref: (3, 9*Cp)               weights, column index = tap*Cp + c, tap = ky*3+kx
    o_ref: (1, 3, H*W)             flattened NCHW output (lane-dense last dim)
    """
    Cp = x_ref.shape[1]
    HW = H * W
    halo = W + 1

    x = x_ref[0]  # (Cp, HW + 2*(W+1)), spatial in lanes

    # Column index of every output pixel; only the left/right image borders
    # need masking (the top/bottom halo reads land in the zero flat-padding).
    w_idx = lax.broadcasted_iota(jnp.int32, (Cp, HW), 1) % W
    mask_l = w_idx >= 1            # reading column w-1 is valid
    mask_r = w_idx < (W - 1)       # reading column w+1 is valid

    taps = []
    for ky in range(3):
        for kx in range(3):
            d = (ky - 1) * W + (kx - 1)
            start = d + halo                       # static, in [0, 2*W+2]
            piece = x[:, start:start + HW]         # static lane-offset slice, (Cp, HW)
            if kx == 0:
                piece = jnp.where(mask_l, piece, 0.0)
            elif kx == 2:
                piece = jnp.where(mask_r, piece, 0.0)
            taps.append(piece)

    # (9*Cp, HW); Cp is a multiple of 8 so the sublane concat is tile-aligned.
    s = jnp.concatenate(taps, axis=0)

    # Single fused MXU dot: (3, 9*Cp) @ (9*Cp, HW) -> (3, HW), lane-dense output.
    out = jnp.dot(w_ref[...], s, preferred_element_type=jnp.float32)
    o_ref[0] = jnp.tanh(out).astype(o_ref.dtype)


@jax.jit
def image_generator_forward(x_nchw, w_oihw):
    """Forward pass equivalent to:
        nn.Sequential(nn.Conv2d(gen_dim, 3, 3, 1, 1, bias=False), nn.Tanh())

    x_nchw: (B, C_in, H, W) float32
    w_oihw: (3, C_in, 3, 3) float32  (PyTorch Conv2d weight layout)
    returns: (B, 3, H, W) float32
    """
    B, C, H, W = x_nchw.shape
    HW = H * W
    Cp = ((C + 7) // 8) * 8            # pad channels to a sublane multiple
    halo = W + 1

    # Free reshape + one small fused zero-pad: channel pad + flat halo so every
    # 3x3 tap is a static lane-offset slice inside the kernel.
    x_flat = jnp.pad(
        x_nchw.reshape(B, C, HW),
        ((0, 0), (0, Cp - C), (halo, halo)),
    )

    # (O=3, I=C, kH, kW) -> channel-pad -> (3, 9*Cp) with column = tap*Cp + c.
    w_pad = jnp.pad(w_oihw, ((0, 0), (0, Cp - C), (0, 0), (0, 0)))
    w_mat = jnp.transpose(w_pad.reshape(3, Cp, 9), (0, 2, 1)).reshape(3, 9 * Cp)

    kernel = functools.partial(_conv3x3_tanh_kernel, H=H, W=W)

    out_flat = pl.pallas_call(
        kernel,
        out_shape=jax.ShapeDtypeStruct((B, 3, HW), x_nchw.dtype),
        grid=(B,),
        in_specs=[
            pl.BlockSpec((1, Cp, HW + 2 * halo), lambda b: (b, 0, 0)),
            pl.BlockSpec((3, 9 * Cp), lambda b: (0, 0)),
        ],
        out_specs=pl.BlockSpec((1, 3, HW), lambda b: (b, 0, 0)),
        compiler_params=pltpu.CompilerParams(
            dimension_semantics=("parallel",)
        ),
    )(x_flat, w_mat)

    # Free reshape back to NCHW.
    return out_flat.reshape(B, 3, H, W)


def _reference_forward(x_nchw, w_oihw):
    """Pure-JAX reference (lax conv, NCHW/OIHW) for correctness checking."""
    y = lax.conv_general_dilated(
        x_nchw, w_oihw,
        window_strides=(1, 1),
        padding=((1, 1), (1, 1)),
        dimension_numbers=("NCHW", "OIHW", "NCHW"),
    )
    return jnp.tanh(y)


if __name__ == "__main__":
    # Small shapes consistent with the module: batch=2, gen_dim=4, spatial=16.
    B, GEN_DIM, H, W = 2, 4, 16, 16

    key = jax.random.PRNGKey(0)
    kx_, kw_ = jax.random.split(key)

    x = jax.random.normal(kx_, (B, GEN_DIM, H, W), dtype=jnp.float32)

    # Deterministic Conv2d weight init (PyTorch default: U(-1/sqrt(fan_in), +)).
    fan_in = GEN_DIM * 3 * 3
    bound = 1.0 / (fan_in ** 0.5)
    w = jax.random.uniform(
        kw_, (3, GEN_DIM, 3, 3), dtype=jnp.float32, minval=-bound, maxval=bound
    )

    out = jax.block_until_ready(image_generator_forward(x, w))

    ref = _reference_forward(x, w)
    assert out.shape == (B, 3, H, W)
    assert jnp.allclose(out, ref, atol=3e-5, rtol=1e-5), "mismatch vs reference"

    print("KERNEL_OK")
</pallas_src>

<mosaic_0001>
module attributes {stable_mosaic.version = 11 : i64} {
  func.func @_conv3x3_tanh_kernel(%arg0: i32, %arg1: memref<1x8x290xf32, #tpu.memory_space<vmem>>, %arg2: memref<3x72xf32, #tpu.memory_space<vmem>>, %arg3: memref<1x3x256xf32, #tpu.memory_space<vmem>>) attributes {dimension_semantics = [#tpu.dimension_semantics<parallel>], iteration_bounds = array<i64: 2>, scalar_prefetch = 0 : i64, scratch_operands = 0 : i64, tpu.core_type = #tpu.core_type<tc>, window_params = [{transform_indices = @transform_0, window_bounds = array<i64: 1, 8, 290>}, {pipeline_mode = #tpu.pipeline_mode<synchronous>, transform_indices = @transform_1, window_bounds = array<i64: 3, 72>}, {transform_indices = @transform_2, window_bounds = array<i64: 1, 3, 256>}]} {
    %c0 = arith.constant 0 : index
    %c0_0 = arith.constant 0 : index
    %c0_1 = arith.constant 0 : index
    %0 = vector.load %arg1[%c0, %c0_0, %c0_1] : memref<1x8x290xf32, #tpu.memory_space<vmem>>, vector<1x8x290xf32>
    %1 = vector.shape_cast %0 : vector<1x8x290xf32> to vector<8x290xf32>
    %2 = tpu.iota {dimensions = array<i32: 1>} : vector<8x256xi32>
    %c16_i32 = arith.constant 16 : i32
    %c0_i32 = arith.constant 0 : i32
    %3 = arith.cmpi eq, %c16_i32, %c0_i32 : i32
    %c1_i32 = arith.constant 1 : i32
    %4 = arith.select %3, %c1_i32, %c16_i32 : i32
    %5 = vector.broadcast %4 : i32 to vector<8x256xi32>
    %6 = arith.remsi %2, %5 : vector<8x256xi32>
    %c0_i32_2 = arith.constant 0 : i32
    %7 = vector.broadcast %c0_i32_2 : i32 to vector<8x256xi32>
    %8 = arith.cmpi ne, %6, %7 : vector<8x256xi32>
    %c0_i32_3 = arith.constant 0 : i32
    %9 = vector.broadcast %c0_i32_3 : i32 to vector<8x256xi32>
    %10 = arith.cmpi slt, %6, %9 : vector<8x256xi32>
    %c0_i32_4 = arith.constant 0 : i32
    %11 = arith.cmpi slt, %4, %c0_i32_4 : i32
    %12 = vector.broadcast %11 : i1 to vector<8x256xi1>
    %13 = vector.broadcast %12 : vector<8x256xi1> to vector<8x256xi1>
    %14 = arith.xori %10, %13 : vector<8x256xi1>
    %15 = arith.andi %14, %8 : vector<8x256xi1>
    %16 = vector.broadcast %4 : i32 to vector<8x256xi32>
    %17 = arith.addi %6, %16 : vector<8x256xi32>
    %18 = arith.select %15, %17, %6 : vector<8x256xi1>, vector<8x256xi32>
    %c1_i32_5 = arith.constant 1 : i32
    %19 = vector.broadcast %c1_i32_5 : i32 to vector<8x256xi32>
    %20 = arith.cmpi sge, %18, %19 : vector<8x256xi32>
    %c15_i32 = arith.constant 15 : i32
    %21 = vector.broadcast %c15_i32 : i32 to vector<8x256xi32>
    %22 = arith.cmpi slt, %18, %21 : vector<8x256xi32>
    %23 = vector.extract_strided_slice %1 {offsets = [0, 0], sizes = [8, 256], strides = [1, 1]} : vector<8x290xf32> to vector<8x256xf32>
    %cst = arith.constant 0.000000e+00 : f32
    %24 = vector.broadcast %cst : f32 to vector<8x256xf32>
    %25 = arith.select %20, %23, %24 : vector<8x256xi1>, vector<8x256xf32>
    %26 = vector.extract_strided_slice %1 {offsets = [0, 1], sizes = [8, 256], strides = [1, 1]} : vector<8x290xf32> to vector<8x256xf32>
    %27 = vector.extract_strided_slice %1 {offsets = [0, 2], sizes = [8, 256], strides = [1, 1]} : vector<8x290xf32> to vector<8x256xf32>
    %cst_6 = arith.constant 0.000000e+00 : f32
    %28 = vector.broadcast %cst_6 : f32 to vector<8x256xf32>
    %29 = arith.select %22, %27, %28 : vector<8x256xi1>, vector<8x256xf32>
    %30 = vector.extract_strided_slice %1 {offsets = [0, 16], sizes = [8, 256], strides = [1, 1]} : vector<8x290xf32> to vector<8x256xf32>
    %cst_7 = arith.constant 0.000000e+00 : f32
    %31 = vector.broadcast %cst_7 : f32 to vector<8x256xf32>
    %32 = arith.select %20, %30, %31 : vector<8x256xi1>, vector<8x256xf32>
    %33 = vector.extract_strided_slice %1 {offsets = [0, 17], sizes = [8, 256], strides = [1, 1]} : vector<8x290xf32> to vector<8x256xf32>
    %34 = vector.extract_strided_slice %1 {offsets = [0, 18], sizes = [8, 256], strides = [1, 1]} : vector<8x290xf32> to vector<8x256xf32>
    %cst_8 = arith.constant 0.000000e+00 : f32
    %35 = vector.broadcast %cst_8 : f32 to vector<8x256xf32>
    %36 = arith.select %22, %34, %35 : vector<8x256xi1>, vector<8x256xf32>
    %37 = vector.extract_strided_slice %1 {offsets = [0, 32], sizes = [8, 256], strides = [1, 1]} : vector<8x290xf32> to vector<8x256xf32>
    %cst_9 = arith.constant 0.000000e+00 : f32
    %38 = vector.broadcast %cst_9 : f32 to vector<8x256xf32>
    %39 = arith.select %20, %37, %38 : vector<8x256xi1>, vector<8x256xf32>
    %40 = vector.extract_strided_slice %1 {offsets = [0, 33], sizes = [8, 256], strides = [1, 1]} : vector<8x290xf32> to vector<8x256xf32>
    %41 = vector.extract_strided_slice %1 {offsets = [0, 34], sizes = [8, 256], strides = [1, 1]} : vector<8x290xf32> to vector<8x256xf32>
    %cst_10 = arith.constant 0.000000e+00 : f32
    %42 = vector.broadcast %cst_10 : f32 to vector<8x256xf32>
    %43 = arith.select %22, %41, %42 : vector<8x256xi1>, vector<8x256xf32>
    %44 = tpu.concatenate %25, %26, %29, %32, %33, %36, %39, %40, %43 in 0 : vector<8x256xf32>, vector<8x256xf32>, vector<8x256xf32>, vector<8x256xf32>, vector<8x256xf32>, vector<8x256xf32>, vector<8x256xf32>, vector<8x256xf32>, vector<8x256xf32> -> vector<72x256xf32>
    %c0_11 = arith.constant 0 : index
    %c0_12 = arith.constant 0 : index
    %45 = vector.load %arg2[%c0_11, %c0_12] : memref<3x72xf32, #tpu.memory_space<vmem>>, vector<3x72xf32>
    %cst_13 = arith.constant dense<0.000000e+00> : vector<3x256xf32>
    %46 = tpu.matmul %45, %44, %cst_13 {dimension_numbers = #tpu.dot_dimension_numbers<[1], [0], [0], [1], [0, 0, 1, 1], [], []>} : vector<3x72xf32>, vector<72x256xf32>, vector<3x256xf32> -> vector<3x256xf32>
    %47 = math.tanh %46 : vector<3x256xf32>
    %c0_14 = arith.constant 0 : index
    %c0_15 = arith.constant 0 : index
    %c0_16 = arith.constant 0 : index
    %48 = vector.load %arg3[%c0_14, %c0_15, %c0_16] : memref<1x3x256xf32, #tpu.memory_space<vmem>>, vector<1x3x256xf32>
    %49 = vector.shape_cast %48 : vector<1x3x256xf32> to vector<3x256xf32>
    %50 = vector.shape_cast %47 : vector<3x256xf32> to vector<1x3x256xf32>
    tpu.vector_store %arg3[%c0_14, %c0_15, %c0_16], %50 {strides = array<i32>} : memref<1x3x256xf32, #tpu.memory_space<vmem>>, vector<1x3x256xf32>,
    return
  }
  func.func @transform_0(%arg0: i32) -> (i32, i32, i32) {
    %c0_i32 = arith.constant 0 : i32
    %c0_i32_0 = arith.constant 0 : i32
    %c0_i32_1 = arith.constant 0 : i32
    return %arg0, %c0_i32, %c0_i32_0 : i32, i32, i32
  }
  func.func @transform_1(%arg0: i32) -> (i32, i32) {
    %c0_i32 = arith.constant 0 : i32
    %c0_i32_0 = arith.constant 0 : i32
    %c0_i32_1 = arith.constant 0 : i32
    return %c0_i32, %c0_i32_0 : i32, i32
  }
  func.func @transform_2(%arg0: i32) -> (i32, i32, i32) {
    %c0_i32 = arith.constant 0 : i32
    %c0_i32_0 = arith.constant 0 : i32
    %c0_i32_1 = arith.constant 0 : i32
    return %arg0, %c0_i32, %c0_i32_0 : i32, i32, i32
  }
}

</mosaic_0001>

<llo_original>
// kernel: image_generator_forward.1
$region0: #{image_generator_forward.1}
  #allocation0 [shape = 'u32[]', space=smem, size = 0x4, offset = 0x4, fixed_abs, tag = 'smem constant byte address 0x4 - core index']
  #allocation1 [shape = 'u32[144,128]{1,0:T(1,128)}', space=vmem, size = 0x12000, scoped, tag = 'internal scratch']
  %s0 = inlined_call_operand.vmem [shape: f32[2,8,290], index: 0, kind: input, shape index: {}]
  %s1 = inlined_call_operand.vmem [shape: f32[3,72], index: 1, kind: input, shape index: {}]
  %s2 = inlined_call_operand.vmem [shape: f32[2,3,256], index: 2, kind: output, shape index: {}]
  %s3 = sld [smem:[#allocation0]]
  $region41: #{image_generator_forward.1} parent=0
    _
  %s5 = ssub.s32 1, %s3
  %s6 = scalar_select 0, %s5, %s3
  loop: start=0, step=1, limit=4
  $region2: #{image_generator_forward.1} parent=0 // loop_pre_header
    _
  $region3: #{image_generator_forward.1} parent=0 // loop_header
    %s8 = sphi 0, %s12
    %p9 = scmp.ge.s32.totalorder %s8, 4
    %s18 = sphi 0, %s20
    %s21 = sphi 0, %s18
    %s22 = sphi 0, %s21
    %s38 = sphi 0, %s22
    %s42 = sphi 0, %s42
    %s44 = sphi 0, %s42
    %s45 = sphi 0, %s44
    %s59 = sphi 0, %s45
    %s65 = sphi 0, %s67
    %s68 = sphi 0, %s65
    %s69 = sphi 0, %s68
    %s85 = sphi 0, %s69
  $region4: #{image_generator_forward.1} parent=0 // loop_header_branch
    %11 = sbr.rel (%p9) target = $region8
  $region5: #{image_generator_forward.1} parent=0 // loop_body
    %s13 = ssub.s32 %s8, 1
    %s14 = ssub.s32 %s8, 2
    %s15 = sadd.s32 %s8, 1
    %s16 = ssub.s32 %s8, %s15
    %p17 = scmp.eq.s32.totalorder %s16, 0
    %s19 = sadd.s32 %s18, 1
    %s20 = scalar_select %p17, %s18, %s19
    %p23 = pneg %p17
    %p24 = scmp.eq.s32.totalorder %s8, 1
    %p25 = por %p23, %p24
    %p26 = scmp.ne.s32.totalorder %s18, %s21
    %p27 = scmp.eq.s32.totalorder %s8, 0
    %p28 = por %p26, %p27
    %p29 = scmp.ne.s32.totalorder %s18, %s21
    %p30 = scmp.eq.s32.totalorder %s13, 1
    %p31 = por %p29, %p30
    %p32 = scmp.ne.s32.totalorder %s21, %s22
    %p33 = scmp.eq.s32.totalorder %s13, 0
    %p34 = por %p32, %p33
    %p35 = scmp.ne.s32.totalorder %s21, %s22
    %p36 = scmp.eq.s32.totalorder %s14, 1
    %p37 = por %p35, %p36
    %p39 = scmp.ne.s32.totalorder %s22, %s38
    %p40 = scmp.eq.s32.totalorder %s14, 0
    %p41 = por %p39, %p40
    %s43 = sadd.s32 %s42, 1
    %p46 = scmp.eq.s32.totalorder %s8, 1
    %p47 = scmp.ne.s32.totalorder %s42, %s44
    %p48 = scmp.eq.s32.totalorder %s8, 0
    %p49 = por %p47, %p48
    %p50 = scmp.ne.s32.totalorder %s42, %s44
    %p51 = scmp.eq.s32.totalorder %s13, 1
    %p52 = por %p50, %p51
    %p53 = scmp.ne.s32.totalorder %s44, %s45
    %p54 = scmp.eq.s32.totalorder %s13, 0
    %p55 = por %p53, %p54
    %p56 = scmp.ne.s32.totalorder %s44, %s45
    %p57 = scmp.eq.s32.totalorder %s14, 1
    %p58 = por %p56, %p57
    %p60 = scmp.ne.s32.totalorder %s45, %s59
    %p61 = scmp.eq.s32.totalorder %s14, 0
    %p62 = por %p60, %p61
    %s63 = ssub.s32 %s8, %s15
    %p64 = scmp.eq.s32.totalorder %s63, 0
    %s66 = sadd.s32 %s65, 1
    %s67 = scalar_select %p64, %s65, %s66
    %p70 = pneg %p64
    %p71 = scmp.eq.s32.totalorder %s8, 1
    %p72 = por %p70, %p71
    %p73 = scmp.ne.s32.totalorder %s65, %s68
    %p74 = scmp.eq.s32.totalorder %s8, 0
    %p75 = por %p73, %p74
    %p76 = scmp.ne.s32.totalorder %s65, %s68
    %p77 = scmp.eq.s32.totalorder %s13, 1
    %p78 = por %p76, %p77
    %p79 = scmp.ne.s32.totalorder %s68, %s69
    %p80 = scmp.eq.s32.totalorder %s13, 0
    %p81 = por %p79, %p80
    %p82 = scmp.ne.s32.totalorder %s68, %s69
    %p83 = scmp.eq.s32.totalorder %s14, 1
    %p84 = por %p82, %p83
    %p86 = scmp.ne.s32.totalorder %s69, %s85
    %p87 = scmp.eq.s32.totalorder %s14, 0
    %p88 = por %p86, %p87
    %p89 = scmp.le.s32.totalorder 1, %s8
    %p90 = scmp.lt.s32.totalorder %s8, 3
    %p91 = pnand %p89, %p90
    %p92 = pneg %p91
    // Predicated region
    $region9: #{image_generator_forward.1} parent=5 // pred_check
      _
    $region10: #{image_generator_forward.1} parent=5 // pred_check_branch
      %94 = sbr.rel (%p91) target = $region12
    $region11: #{image_generator_forward.1} parent=5 // pred_region
      %s95 = ssub.s32 %s8, 1
      // Predicated region
      $region13: #{image_generator_forward.1} parent=11 // pred_check
        %p96 = pneg %p55
      $region14: #{image_generator_forward.1} parent=11 // pred_check_branch
        %98 = sbr.rel (%p96) target = $region16
      $region15: #{image_generator_forward.1} parent=11 // pred_region
        _
      $region16: #{image_generator_forward.1} parent=11 // pred_fallthru
        _
    $region12: #{image_generator_forward.1} parent=5 // pred_fallthru
      _
    %p99 = scmp.lt.s32.totalorder %s8, 2
    // Predicated region
    $region17: #{image_generator_forward.1} parent=5 // pred_check
      %p100 = pneg %p99
    $region18: #{image_generator_forward.1} parent=5 // pred_check_branch
      %102 = sbr.rel (%p100) target = $region20
    $region19: #{image_generator_forward.1} parent=5 // pred_region
      // Predicated region
      $region21: #{image_generator_forward.1} parent=19 // pred_check
        %p103 = pneg %p28
      $region22: #{image_generator_forward.1} parent=19 // pred_check_branch
        %105 = sbr.rel (%p103) target = $region24
      $region23: #{image_generator_forward.1} parent=19 // pred_region
        %p106 = scmp.lt.s32.totalorder %s8, 1
        %s107 = scalar_select %p106, %s8, 1
        %s108 = smul.addr %s107, 3
        %s109 = smul.addr %s108, 8
        %s110 = scalar_lea.vmem %s0, %s109
      $region24: #{image_generator_forward.1} parent=19 // pred_fallthru
        _
    $region20: #{image_generator_forward.1} parent=5 // pred_fallthru
      _
    %p111 = scmp.le.s32.totalorder 1, %s8
    %p112 = scmp.lt.s32.totalorder %s8, 3
    %p113 = pnand %p111, %p112
    %p114 = pneg %p113
    // Predicated region
    $region25: #{image_generator_forward.1} parent=5 // pred_check
      _
    $region26: #{image_generator_forward.1} parent=5 // pred_check_branch
      %116 = sbr.rel (%p113) target = $region28
    $region27: #{image_generator_forward.1} parent=5 // pred_region
      %s117 = ssub.s32 %s8, 1
      %p118 = scmp.lt.s32.totalorder %s13, 1
      %s119 = scalar_select %p118, %s13, 1
      %s120 = smul.addr %s119, 3
      %s121 = smul.addr %s120, 8
      %s122 = scalar_lea.vmem %s0, %s121
      %p123 = pneg %p34
      %p124 = pneg %p31
      %p125 = pneg %p55
      %p126 = pneg %p52
      %p127 = pneg %p81
      %p128 = pneg %p78
      %p129 = scmp.lt.s32.totalorder %s13, 1
      %s130 = scalar_select %p129, %s13, 1
      %s131 = smul.addr %s130, 2
      %s132 = smul.addr %s131, 4
      %s133 = scalar_lea.vmem %s2, %s132
      %p134 = scmp.lt.s32.totalorder %s13, 1
      %s135 = scalar_select %p134, %s13, 1
      %s136 = smul.addr %s135, 3
      %s137 = smul.addr %s136, 8
      %s138 = scalar_lea.vmem %s0, %s137
      %p139 = scmp.lt.s32.totalorder %s13, 1
      %s140 = scalar_select %p139, %s13, 1
      %s141 = smul.addr %s140, 2
      %s142 = smul.addr %s141, 4
      %s143 = scalar_lea.vmem %s2, %s142
      %v144 = vld [vmem:[%s138] sm:$0xff]
      %v145 = vld [vmem:[%s138 + $0x8] sm:$0xff]
      %v146 = vld [vmem:[%s138 + $0x10] sm:$0xff]
      %v147 = vlaneseq
      %v148 = vand.u32 %v147, 127
      %v149 = vadd.s32 %v148, 128
      %vm150 = vcmp.lt.s32.totalorder %v148, 0
      %v151 = vsub.s32 0, %v148
      %v152 = vsel %vm150, %v151, %v148
      %v153 = vshrl.u32 %v152, 4
      %v154 = vand.u32 %v152, 15
      %v155 = vsub.s32 0, %v154
      %v156 = vsel %vm150, %v155, %v154
      %vm157 = vcmp.lt.s32.totalorder %v149, 0
      %v158 = vsub.s32 0, %v149
      %v159 = vsel %vm157, %v158, %v149
      %v160 = vshrl.u32 %v159, 4
      %v161 = vand.u32 %v159, 15
      %v162 = vsub.s32 0, %v161
      %v163 = vsel %vm157, %v162, %v161
      %vm164 = vcmp.ne.s32.totalorder %v156, 0
      %vm165 = vcmp.ne.s32.totalorder %v163, 0
      %vm166 = vcmp.lt.s32.totalorder %v156, 0
      %vm167 = vcmp.lt.s32.totalorder %v163, 0
      %vm168 = vmand %vm166, %vm164
      %vm169 = vmand %vm167, %vm165
      %v170 = vadd.s32 %v156, 16
      %v171 = vadd.s32 %v163, 16
      %v172 = vsel %vm168, %v170, %v156
      %v173 = vsel %vm169, %v171, %v163
      %vm174 = vcmp.ge.s32.totalorder %v172, 1
      %vm175 = vcmp.ge.s32.totalorder %v173, 1
      %vm176 = vcmp.lt.s32.totalorder %v172, 15
      %vm177 = vcmp.lt.s32.totalorder %v173, 15
      %v178 = vsel %vm174, %v144, 0.0
      %v179 = vsel %vm175, %v145, 0.0
      %183 = vrot.lane.b32.xlu0 %v144, 126
      %v184 = vpop.permute.xlu0 %183
      %185 = vrot.lane.b32.xlu0 %v145, 126
      %v186 = vpop.permute.xlu0 %185
      %187 = vrot.lane.b32.xlu0 %v146, 126
      %v188 = vpop.permute.xlu0 %187
      %vm189 = vcmask 1031168
      %v190 = vsel %vm189, %v184, %v186
      %v191 = vsel %vm189, %v186, %v188
      %v194 = vsel %vm176, %v190, 0.0
      %v195 = vsel %vm177, %v191, 0.0
      %196 = vrot.lane.b32.xlu0 %v144, 112
      %v197 = vpop.permute.xlu0 %196
      %198 = vrot.lane.b32.xlu0 %v145, 112
      %v199 = vpop.permute.xlu0 %198
      %200 = vrot.lane.b32.xlu0 %v146, 112
      %v201 = vpop.permute.xlu0 %200
      %vm202 = vcmask 916480
      %v203 = vsel %vm202, %v197, %v199
      %v204 = vsel %vm202, %v199, %v201
      %v207 = vsel %vm174, %v203, 0.0
      %v208 = vsel %vm175, %v204, 0.0
      %209 = vrot.lane.b32.xlu0 %v144, 110
      %v210 = vpop.permute.xlu0 %209
      %211 = vrot.lane.b32.xlu0 %v145, 110
      %v212 = vpop.permute.xlu0 %211
      %213 = vrot.lane.b32.xlu0 %v146, 110
      %v214 = vpop.permute.xlu0 %213
      %vm215 = vcmask 900096
      %v216 = vsel %vm215, %v210, %v212
      %v217 = vsel %vm215, %v212, %v214
      %v220 = vsel %vm176, %v216, 0.0
      %v221 = vsel %vm177, %v217, 0.0
      %222 = vrot.lane.b32.xlu0 %v144, 96
      %v223 = vpop.permute.xlu0 %222
      %224 = vrot.lane.b32.xlu0 %v145, 96
      %v225 = vpop.permute.xlu0 %224
      %226 = vrot.lane.b32.xlu0 %v146, 96
      %v227 = vpop.permute.xlu0 %226
      %vm228 = vcmask 785408
      %v229 = vsel %vm228, %v223, %v225
      %v230 = vsel %vm228, %v225, %v227
      %v233 = vsel %vm174, %v229, 0.0
      %v234 = vsel %vm175, %v230, 0.0
      %235 = vrot.lane.b32.xlu0 %v144, 94
      %v236 = vpop.permute.xlu0 %235
      %237 = vrot.lane.b32.xlu0 %v145, 94
      %v238 = vpop.permute.xlu0 %237
      %239 = vrot.lane.b32.xlu0 %v146, 94
      %v240 = vpop.permute.xlu0 %239
      %vm241 = vcmask 769024
      %v242 = vsel %vm241, %v236, %v238
      %v243 = vsel %vm241, %v238, %v240
      %v246 = vsel %vm176, %v242, 0.0
      %v247 = vsel %vm177, %v243, 0.0
      %248 = vrot.lane.b32.xlu0 %v144, 127
      %v249 = vpop.permute.xlu0 %248
      %250 = vrot.lane.b32.xlu0 %v145, 127
      %v251 = vpop.permute.xlu0 %250
      %252 = vrot.lane.b32.xlu0 %v146, 127
      %v253 = vpop.permute.xlu0 %252
      %vm254 = vcmask 1039360
      %v255 = vsel %vm254, %v249, %v251
      %v256 = vsel %vm254, %v251, %v253
      %259 = vrot.lane.b32.xlu0 %v144, 111
      %v260 = vpop.permute.xlu0 %259
      %261 = vrot.lane.b32.xlu0 %v145, 111
      %v262 = vpop.permute.xlu0 %261
      %263 = vrot.lane.b32.xlu0 %v146, 111
      %v264 = vpop.permute.xlu0 %263
      %vm265 = vcmask 908288
      %v266 = vsel %vm265, %v260, %v262
      %v267 = vsel %vm265, %v262, %v264
      %270 = vrot.lane.b32.xlu0 %v144, 95
      %v271 = vpop.permute.xlu0 %270
      %272 = vrot.lane.b32.xlu0 %v145, 95
      %v273 = vpop.permute.xlu0 %272
      %274 = vrot.lane.b32.xlu0 %v146, 95
      %v275 = vpop.permute.xlu0 %274
      %vm276 = vcmask 777216
      %v277 = vsel %vm276, %v271, %v273
      %v278 = vsel %vm276, %v273, %v275
      %v281 = vld [vmem:[%s1] sm:$0x7]
      %vm282 = vcmask 588800
      %v284 = vsel %vm282, %v281, 0
      %286 = vmatprep.subr.mxu0 %v179
      %287 = vmatpush1.msra.mxu0 %v178
      %288 = vmatprep.subr.mxu0 %v256
      %289 = vmatpush1.msra.mxu0 %v255
      %290 = vmatprep.subr.mxu0 %v195
      %291 = vmatpush1.msra.mxu0 %v194
      %292 = vmatprep.subr.mxu0 %v208
      %293 = vmatpush1.msra.mxu0 %v207
      %294 = vmatprep.subr.mxu0 %v267
      %295 = vmatpush1.msra.mxu0 %v266
      %296 = vmatprep.subr.mxu0 %v221
      %297 = vmatpush1.msra.mxu0 %v220
      %298 = vmatprep.subr.mxu0 %v234
      %299 = vmatpush1.msra.mxu0 %v233
      %300 = vmatprep.subr.mxu0 %v278
      %301 = vmatpush1.msra.mxu0 %v277
      %302 = vmatprep.subr.mxu0 %v247
      %303 = vmatpush1.msra.mxu0 %v246
      %304 = vmatprep.subr.mxu0 0.0
      %305 = vmatpush1.msra.mxu0 0.0
      %306 = vmatprep.subr.mxu0 0.0
      %307 = vmatpush1.msra.mxu0 0.0
      %308 = vmatprep.subr.mxu0 0.0
      %309 = vmatpush1.msra.mxu0 0.0
      %310 = vmatprep.subr.mxu0 0.0
      %311 = vmatpush1.msra.mxu0 0.0
      %312 = vmatprep.subr.mxu0 0.0
      %313 = vmatpush1.msra.mxu0 0.0
      %314 = vmatprep.subr.mxu0 0.0
      %315 = vmatpush1.msra.mxu0 0.0
      %316 = vmatprep.subr.mxu0 0.0
      %317 = vmatpush1.msra.mxu0 0.0
      %318 = vmatprep.subr.mxu0 0.0
      %319 = vmatpush1.msra.mxu0 0.0
      %320 = vmatprep.subr.mxu0 0.0
      %321 = vmatpush1.msra.mxu0 0.0
      %322 = vmatprep.subr.mxu0 0.0
      %323 = vmatpush1.msra.mxu0 0.0
      %324 = vmatprep.subr.mxu0 0.0
      %325 = vmatpush1.msra.mxu0 0.0
      %326 = vmatprep.subr.mxu0 0.0
      %327 = vmatpush1.msra.mxu0 0.0
      %328 = vmatprep.subr.mxu0 0.0
      %329 = vmatpush1.msra.mxu0 0.0
      %330 = vmatprep.subr.mxu0 0.0
      %331 = vmatpush1.msra.mxu0 0.0
      %332 = vmatprep.subr.mxu0 0.0
      %333 = vmatpush1.msra.mxu0 0.0
      %334 = vmatprep.subr.mxu0 0.0
      %335 = vmatpush1.msra.mxu0 0.0
      %336 = vmatprep.subr.mxu0 0.0
      %337 = vmatpush1.msra.mxu0 0.0
      %338 = vmatprep.subr.mxu0 0.0
      %339 = vmatpush1.msra.mxu0 0.0
      %340 = vmatprep.subr.mxu0 0.0
      %341 = vmatpush1.msra.mxu0 0.0
      %342 = vmatprep.subr.mxu0 0.0
      %343 = vmatpush1.msra.mxu0 0.0
      %344 = vmatprep.subr.mxu0 0.0
      %345 = vmatpush1.msra.mxu0 0.0
      %346 = vmatprep.subr.mxu0 0.0
      %347 = vmatpush1.msra.mxu0 0.0
      %348 = vmatprep.subr.mxu0 0.0
      %349 = vmatpush1.msra.mxu0 0.0
      %350 = vmatprep.mubr.f32.mxu0 0.0
      %351 = vmatmul.mubr.f32.gmra.mrb[0].mxu0 %v284
      %v352 = vpop.f32.mrb[0].mxu0
      %v353 = vadd.f32 0.0, %v352
      %v354 = vpop.f32.mrb[0].mxu0
      %v355 = vadd.f32 0.0, %v354
      %356 = vdwg.mxu0
      %v357 = vtanh.pop %v353
      %v358 = vtanh.pop %v355
      %v361 = vcombine.low %v357, %v358
      %363 = vst [vmem:[%s143] sm:$0x77] %v361
      %p364 = scmp.lt.s32.totalorder %s13, 1
      %s365 = scalar_select %p364, %s13, 1
      %s366 = smul.addr %s365, 2
      %s367 = smul.addr %s366, 4
      %s368 = scalar_lea.vmem %s2, %s367
      // Predicated region
      $region29: #{image_generator_forward.1} parent=27 // pred_check
        %p369 = pneg %p78
      $region30: #{image_generator_forward.1} parent=27 // pred_check_branch
        %371 = sbr.rel (%p369) target = $region32
      $region31: #{image_generator_forward.1} parent=27 // pred_region
        _
      $region32: #{image_generator_forward.1} parent=27 // pred_fallthru
        _
    $region28: #{image_generator_forward.1} parent=5 // pred_fallthru
      _
    %p372 = scmp.le.s32.totalorder 2, %s8
    // Predicated region
    $region33: #{image_generator_forward.1} parent=5 // pred_check
      %p373 = pneg %p372
    $region34: #{image_generator_forward.1} parent=5 // pred_check_branch
      %375 = sbr.rel (%p373) target = $region36
    $region35: #{image_generator_forward.1} parent=5 // pred_region
      %s376 = ssub.s32 %s8, 2
      // Predicated region
      $region37: #{image_generator_forward.1} parent=35 // pred_check
        %p377 = pneg %p84
      $region38: #{image_generator_forward.1} parent=35 // pred_check_branch
        %379 = sbr.rel (%p377) target = $region40
      $region39: #{image_generator_forward.1} parent=35 // pred_region
        %p380 = scmp.lt.s32.totalorder %s14, 1
        %s381 = scalar_select %p380, %s14, 1
        %s382 = smul.addr %s381, 2
        %s383 = smul.addr %s382, 4
        %s384 = scalar_lea.vmem %s2, %s383
      $region40: #{image_generator_forward.1} parent=35 // pred_fallthru
        _
    $region36: #{image_generator_forward.1} parent=5 // pred_fallthru
      _
  $region6: #{image_generator_forward.1} parent=0 // loop_footer
    %s12 = sadd.s32 1, %s8
  $region7: #{image_generator_forward.1} parent=0 // loop_footer_branch
    %7 = sbr.rel target = $region3
  $region8: #{image_generator_forward.1} parent=0 // loop_exit
    _

</llo_original>
